<compile_context>
chip_gen: v5e
topology: v5e:2x2
jax: 0.10.0
libtpu: 0.0.40
codegen_flags: <defaults>
</compile_context>

<pallas_src>
import functools
import math

import jax
import jax.numpy as jnp
from jax.experimental import pallas as pl
from jax.experimental.pallas import tpu as pltpu

_SQRT_2_OVER_PI = math.sqrt(2.0 / math.pi)
_MIB = 1024 * 1024


def _round_up(n, m):
    return ((n + m - 1) // m) * m


def _gelu_tanh(x):
    # GELU (tanh approx): 0.5*x*(1+tanh(z)) == x*sigmoid(2z).
    # One EUP transcendental + fewer VALU ops than the tanh form.
    z = _SQRT_2_OVER_PI * x * (1.0 + 0.044715 * (x * x))
    return x * jax.nn.sigmoid(2.0 * z)


def _default_gelu_dtype():
    # v6e/v7x have bf16 VPU/EUP paths (2x packed elementwise throughput) and
    # the GELU output feeds the MXU as bf16 anyway; v5e and older keep f32.
    try:
        kind = jax.devices()[0].device_kind.lower()
    except Exception:
        return jnp.float32
    if "v6" in kind or "v7" in kind:
        return jnp.bfloat16
    return jnp.float32


# ------------------------------- kernels ------------------------------------

def _mlp_kernel_resident(x_ref, wfc_ref, bfc_ref, wpr_ref, bpr_ref, o_ref, *,
                         compute_dtype, gelu_dtype):
    """Both weight matrices VMEM-resident; grid = (M tiles,).  No accumulator."""
    x = x_ref[...].astype(compute_dtype)                       # in-kernel cast
    h = jnp.dot(x, wfc_ref[...], preferred_element_type=jnp.float32)
    h = _gelu_tanh((h + bfc_ref[...]).astype(gelu_dtype))
    y = jnp.dot(h.astype(compute_dtype), wpr_ref[...],
                preferred_element_type=jnp.float32)
    o_ref[...] = (y + bpr_ref[...]).astype(o_ref.dtype)


def _mlp_kernel_streamed(x_ref, wfc_ref, bfc_ref, wpr_ref, bpr_ref, o_ref,
                         acc_ref, *, compute_dtype, gelu_dtype):
    """Hidden dim streamed in tiles; grid = (M tiles, H tiles), H innermost."""
    j = pl.program_id(1)

    @pl.when(j == 0)
    def _():
        acc_ref[...] = jnp.zeros_like(acc_ref)

    x = x_ref[...].astype(compute_dtype)
    h = jnp.dot(x, wfc_ref[...], preferred_element_type=jnp.float32)
    h = _gelu_tanh((h + bfc_ref[...]).astype(gelu_dtype))
    acc_ref[...] += jnp.dot(h.astype(compute_dtype), wpr_ref[...],
                            preferred_element_type=jnp.float32)

    @pl.when(j == pl.num_programs(1) - 1)
    def _():
        # c_proj bias added exactly once at finalize.
        o_ref[...] = (acc_ref[...] + bpr_ref[...]).astype(o_ref.dtype)


# ------------------------------- wrapper -------------------------------------

def prepare_mlp_params(w_fc, b_fc, w_proj, b_proj, compute_dtype=jnp.bfloat16):
    """One-time (model-load) conversion: weights -> MXU dtype, biases -> f32 rows."""
    D, H = w_fc.shape
    return dict(
        w_fc=jnp.asarray(w_fc, compute_dtype),
        b_fc=jnp.asarray(b_fc, jnp.float32).reshape(1, H),
        w_proj=jnp.asarray(w_proj, compute_dtype),
        b_proj=jnp.asarray(b_proj, jnp.float32).reshape(1, D),
    )


def mlp_forward(x, params, *, tile_m=256, tile_h=1024, gelu_dtype=None):
    """x: (B, T, D).  params from prepare_mlp_params (w_fc (D,4D), w_proj (4D,D))."""
    wfc, bfc, wpr, bpr = (params["w_fc"], params["b_fc"],
                          params["w_proj"], params["b_proj"])
    B, T, D = x.shape
    H = wfc.shape[1]
    M = B * T
    out_dtype = x.dtype
    compute_dtype = wfc.dtype
    if gelu_dtype is None:
        gelu_dtype = _default_gelu_dtype()

    x_sz = jnp.dtype(x.dtype).itemsize
    w_sz = jnp.dtype(compute_dtype).itemsize
    o_sz = jnp.dtype(out_dtype).itemsize

    # Weight residency decision: both bf16 weight matrices, single-buffered.
    # 28 MiB covers GPT-2 small/medium/large (9.4 / 16 / 25.6 MiB) with room
    # for the activation tiles inside v7x's 64 MiB/TC VMEM.
    weights_bytes = 2 * D * H * w_sz
    use_resident = weights_bytes <= 28 * _MIB

    # M tiling: multiples of 16 (bf16 sublane packing).  If the whole problem
    # fits one tile but M is big enough, split into >=2 tiles so the "parallel"
    # M axis can be sharded across v7x's 2 TensorCores.
    tile_m_eff = tile_m if use_resident else max(tile_m, 512)
    tm = _round_up(min(tile_m_eff, _round_up(M, 16)), 16)
    M_pad = _round_up(M, tm)
    if M_pad // tm == 1 and M > 16:
        tm = _round_up((M + 1) // 2, 16)
        M_pad = _round_up(M, tm)
    n_i = M_pad // tm

    x2 = x.reshape(M, D)
    if M_pad != M:
        x2 = jnp.pad(x2, ((0, M_pad - M), (0, 0)))

    flops = int(4 * M_pad * D * H)             # two (M, D, H) matmuls
    transcendentals = int(M_pad * H)           # one sigmoid per hidden element

    if use_resident:
        # VMEM: weights (1 buffer) + double-buffered x/out tiles + f32/bf16
        # intermediates + biases + slack.
        est = (weights_bytes
               + 2 * tm * D * (x_sz + o_sz)
               + tm * H * (4 + w_sz)
               + (H + D) * 4
               + 2 * _MIB)
        vmem_limit = int(min(max(est * 3 // 2, 32 * _MIB), 56 * _MIB))

        cost = pl.CostEstimate(
            flops=flops, transcendentals=transcendentals,
            bytes_accessed=int(M_pad * D * (x_sz + o_sz)
                               + weights_bytes + (H + D) * 4))

        kernel = functools.partial(_mlp_kernel_resident,
                                   compute_dtype=compute_dtype,
                                   gelu_dtype=gelu_dtype)

        def build(single_buffer_weights, limit):
            wkw = ({"pipeline_mode": pl.Buffered(1)}
                   if single_buffer_weights else {})
            return pl.pallas_call(
                kernel,
                out_shape=jax.ShapeDtypeStruct((M_pad, D), out_dtype),
                grid_spec=pltpu.PrefetchScalarGridSpec(
                    num_scalar_prefetch=0,
                    grid=(n_i,),
                    in_specs=[
                        pl.BlockSpec((tm, D), lambda i: (i, 0)),        # x rows
                        pl.BlockSpec((D, H), lambda i: (0, 0), **wkw),  # c_fc W
                        pl.BlockSpec((1, H), lambda i: (0, 0), **wkw),  # c_fc b
                        pl.BlockSpec((H, D), lambda i: (0, 0), **wkw),  # c_proj W
                        pl.BlockSpec((1, D), lambda i: (0, 0), **wkw),  # c_proj b
                    ],
                    out_specs=pl.BlockSpec((tm, D), lambda i: (i, 0)),
                ),
                compiler_params=pltpu.CompilerParams(
                    dimension_semantics=("parallel",),
                    vmem_limit_bytes=limit),
                cost_estimate=cost,
            )

        try:
            out = build(True, vmem_limit)(x2, wfc, bfc, wpr, bpr)
        except Exception:
            # pl.Buffered(1) unsupported on this jax version: fall back to the
            # default double-buffered constant blocks (more VMEM, same DMAs).
            out = build(False, int(min(vmem_limit + weights_bytes, 112 * _MIB))
                        )(x2, wfc, bfc, wpr, bpr)
    else:
        # Streamed hidden dim: pick the largest th (multiple of 128) dividing H.
        th = None
        for cand in (tile_h, 1024, 512, 256, 128):
            if cand <= H and H % cand == 0 and cand % 128 == 0:
                th = cand
                break
        if th is None:
            th = H
        n_j = H // th

        est = (4 * D * th * w_sz                  # double-buffered weight tiles
               + 2 * tm * D * (x_sz + o_sz)       # double-buffered x / out tiles
               + tm * D * 4                       # f32 accumulator
               + tm * th * (4 + w_sz)             # f32 h + bf16 copy
               + (th + D) * 4 * 2
               + 2 * _MIB)
        vmem_limit = int(min(max(est * 3 // 2, 32 * _MIB), 48 * _MIB))

        cost = pl.CostEstimate(
            flops=flops, transcendentals=transcendentals,
            bytes_accessed=int(M_pad * D * (x_sz + o_sz)
                               + n_i * (weights_bytes + (H + D) * 4)))

        kernel = functools.partial(_mlp_kernel_streamed,
                                   compute_dtype=compute_dtype,
                                   gelu_dtype=gelu_dtype)

        # TODO(synk): serpentine j index_map (reverse j on odd i) would save one
        # weight-tile DMA pair per i boundary; omitted as a minor win.
        out = pl.pallas_call(
            kernel,
            out_shape=jax.ShapeDtypeStruct((M_pad, D), out_dtype),
            grid_spec=pltpu.PrefetchScalarGridSpec(
                num_scalar_prefetch=0,
                grid=(n_i, n_j),
                in_specs=[
                    pl.BlockSpec((tm, D), lambda i, j: (i, 0)),   # x rows (resident over j)
                    pl.BlockSpec((D, th), lambda i, j: (0, j)),   # c_fc W slice
                    pl.BlockSpec((1, th), lambda i, j: (0, j)),   # c_fc b slice
                    pl.BlockSpec((th, D), lambda i, j: (j, 0)),   # c_proj W slice
                    pl.BlockSpec((1, D), lambda i, j: (0, 0)),    # c_proj b
                ],
                out_specs=pl.BlockSpec((tm, D), lambda i, j: (i, 0)),
                scratch_shapes=[pltpu.VMEM((tm, D), jnp.float32)],
            ),
            compiler_params=pltpu.CompilerParams(
                dimension_semantics=("parallel", "arbitrary"),
                vmem_limit_bytes=vmem_limit),
            cost_estimate=cost,
        )(x2, wfc, bfc, wpr, bpr)

    return out[:M].reshape(B, T, D)


def mlp_reference(x, w_fc, b_fc, w_proj, b_proj, *,
                  compute_dtype=jnp.bfloat16, gelu_dtype=None):
    # Mirrors the kernel's numerics: bf16 MXU inputs, f32 accumulation,
    # GELU in the same dtype the kernel uses on this chip.
    if gelu_dtype is None:
        gelu_dtype = _default_gelu_dtype()
    B, T, D = x.shape
    xb = x.reshape(-1, D).astype(compute_dtype)
    h = jnp.dot(xb, w_fc.astype(compute_dtype),
                preferred_element_type=jnp.float32)
    h = _gelu_tanh((h + b_fc.astype(jnp.float32)[None, :]).astype(gelu_dtype))
    y = jnp.dot(h.astype(compute_dtype), w_proj.astype(compute_dtype),
                preferred_element_type=jnp.float32)
    y = y + b_proj.astype(jnp.float32)[None, :]
    return y.astype(x.dtype).reshape(B, T, D)


if __name__ == "__main__":
    # Small GPT-like config: batch=2, seq=8, n_embd=32 -> hidden=128.
    # (D=32 < 128 means lane-masked stores; fine for a correctness demo —
    #  production shapes like D=768 are lane-dense.)
    B, T, D = 2, 8, 32
    H = 4 * D

    key = jax.random.PRNGKey(0)
    kx, kwf, kwp, kx2 = jax.random.split(key, 4)

    x = jax.random.normal(kx, (B, T, D), dtype=jnp.float32)
    # nanoGPT-style synthetic init (std=0.02); NANOGPT_SCALE_INIT only changes
    # initialization scale, not forward semantics.
    w_fc = 0.02 * jax.random.normal(kwf, (D, H), dtype=jnp.float32)
    b_fc = jnp.zeros((H,), dtype=jnp.float32)
    w_proj = 0.02 * jax.random.normal(kwp, (H, D), dtype=jnp.float32)
    b_proj = jnp.zeros((D,), dtype=jnp.float32)

    # One-time (load-time) weight conversion, not per forward call.
    params = prepare_mlp_params(w_fc, b_fc, w_proj, b_proj)

    y = jax.block_until_ready(mlp_forward(x, params))
    y_ref = mlp_reference(x, w_fc, b_fc, w_proj, b_proj)
    assert y.shape == (B, T, D)
    assert jnp.allclose(y, y_ref, atol=1e-3, rtol=1e-2), "mismatch vs reference"

    # Second shape exercising multiple M tiles + row padding (M=120 -> 2 tiles).
    B2, T2 = 3, 40
    x_b = jax.random.normal(kx2, (B2, T2, D), dtype=jnp.float32)
    y_b = jax.block_until_ready(mlp_forward(x_b, params))
    y_b_ref = mlp_reference(x_b, w_fc, b_fc, w_proj, b_proj)
    assert y_b.shape == (B2, T2, D)
    assert jnp.allclose(y_b, y_b_ref, atol=1e-3, rtol=1e-2), "mismatch (tiled)"

    print("KERNEL_OK")
</pallas_src>

<mosaic_0001>
module attributes {stable_mosaic.version = 11 : i64} {
  func.func @_mlp_kernel_resident(%arg0: i32, %arg1: memref<16x32xf32, #tpu.memory_space<vmem>>, %arg2: memref<32x128xbf16, #tpu.memory_space<vmem>>, %arg3: memref<1x128xf32, #tpu.memory_space<vmem>>, %arg4: memref<128x32xbf16, #tpu.memory_space<vmem>>, %arg5: memref<1x32xf32, #tpu.memory_space<vmem>>, %arg6: memref<16x32xf32, #tpu.memory_space<vmem>>) attributes {dimension_semantics = [#tpu.dimension_semantics<parallel>], iteration_bounds = array<i64: 1>, scalar_prefetch = 0 : i64, scratch_operands = 0 : i64, tpu.core_type = #tpu.core_type<tc>, window_params = [{transform_indices = @transform_0, window_bounds = array<i64: 16, 32>}, {pipeline_mode = #tpu.pipeline_mode<synchronous>, transform_indices = @transform_1, window_bounds = array<i64: 32, 128>}, {pipeline_mode = #tpu.pipeline_mode<synchronous>, transform_indices = @transform_2, window_bounds = array<i64: 1, 128>}, {pipeline_mode = #tpu.pipeline_mode<synchronous>, transform_indices = @transform_3, window_bounds = array<i64: 128, 32>}, {pipeline_mode = #tpu.pipeline_mode<synchronous>, transform_indices = @transform_4, window_bounds = array<i64: 1, 32>}, {transform_indices = @transform_5, window_bounds = array<i64: 16, 32>}]} {
    %c0 = arith.constant 0 : index
    %c0_0 = arith.constant 0 : index
    %0 = vector.load %arg1[%c0, %c0_0] : memref<16x32xf32, #tpu.memory_space<vmem>>, vector<16x32xf32>
    %1 = arith.truncf %0 : vector<16x32xf32> to vector<16x32xbf16>
    %c0_1 = arith.constant 0 : index
    %c0_2 = arith.constant 0 : index
    %2 = vector.load %arg2[%c0_1, %c0_2] : memref<32x128xbf16, #tpu.memory_space<vmem>>, vector<32x128xbf16>
    %cst = arith.constant dense<0.000000e+00> : vector<16x128xf32>
    %3 = tpu.matmul %1, %2, %cst {dimension_numbers = #tpu.dot_dimension_numbers<[1], [0], [0], [1], [0, 0, 1, 1], [], []>} : vector<16x32xbf16>, vector<32x128xbf16>, vector<16x128xf32> -> vector<16x128xf32>
    %c0_3 = arith.constant 0 : index
    %c0_4 = arith.constant 0 : index
    %4 = vector.load %arg3[%c0_3, %c0_4] : memref<1x128xf32, #tpu.memory_space<vmem>>, vector<1x128xf32>
    %5 = vector.broadcast %4 : vector<1x128xf32> to vector<16x128xf32>
    %6 = arith.addf %3, %5 : vector<16x128xf32>
    %cst_5 = arith.constant 0.797884583 : f32
    %7 = vector.broadcast %cst_5 : f32 to vector<16x128xf32>
    %8 = arith.mulf %7, %6 : vector<16x128xf32>
    %9 = arith.mulf %6, %6 : vector<16x128xf32>
    %cst_6 = arith.constant 4.471500e-02 : f32
    %10 = vector.broadcast %cst_6 : f32 to vector<16x128xf32>
    %11 = arith.mulf %10, %9 : vector<16x128xf32>
    %cst_7 = arith.constant 1.000000e+00 : f32
    %12 = vector.broadcast %cst_7 : f32 to vector<16x128xf32>
    %13 = arith.addf %12, %11 : vector<16x128xf32>
    %14 = arith.mulf %8, %13 : vector<16x128xf32>
    %cst_8 = arith.constant 2.000000e+00 : f32
    %15 = vector.broadcast %cst_8 : f32 to vector<16x128xf32>
    %16 = arith.mulf %15, %14 : vector<16x128xf32>
    %17 = arith.negf %16 : vector<16x128xf32>
    %18 = math.exp %17 : vector<16x128xf32>
    %cst_9 = arith.constant 1.000000e+00 : f32
    %19 = vector.broadcast %cst_9 : f32 to vector<16x128xf32>
    %20 = arith.addf %19, %18 : vector<16x128xf32>
    %21 = arith.divf %19, %20 : vector<16x128xf32>
    %22 = arith.mulf %6, %21 : vector<16x128xf32>
    %23 = arith.truncf %22 : vector<16x128xf32> to vector<16x128xbf16>
    %c0_10 = arith.constant 0 : index
    %c0_11 = arith.constant 0 : index
    %24 = vector.load %arg4[%c0_10, %c0_11] : memref<128x32xbf16, #tpu.memory_space<vmem>>, vector<128x32xbf16>
    %cst_12 = arith.constant dense<0.000000e+00> : vector<16x32xf32>
    %25 = tpu.matmul %23, %24, %cst_12 {dimension_numbers = #tpu.dot_dimension_numbers<[1], [0], [0], [1], [0, 0, 1, 1], [], []>} : vector<16x128xbf16>, vector<128x32xbf16>, vector<16x32xf32> -> vector<16x32xf32>
    %c0_13 = arith.constant 0 : index
    %c0_14 = arith.constant 0 : index
    %26 = vector.load %arg5[%c0_13, %c0_14] : memref<1x32xf32, #tpu.memory_space<vmem>>, vector<1x32xf32>
    %27 = vector.broadcast %26 : vector<1x32xf32> to vector<16x32xf32>
    %28 = arith.addf %25, %27 : vector<16x32xf32>
    %c0_15 = arith.constant 0 : index
    %c0_16 = arith.constant 0 : index
    %29 = vector.load %arg6[%c0_15, %c0_16] : memref<16x32xf32, #tpu.memory_space<vmem>>, vector<16x32xf32>
    tpu.vector_store %arg6[%c0_15, %c0_16], %28 {strides = array<i32>} : memref<16x32xf32, #tpu.memory_space<vmem>>, vector<16x32xf32>,
    return
  }
  func.func @transform_0(%arg0: i32) -> (i32, i32) {
    %c0_i32 = arith.constant 0 : i32
    %c0_i32_0 = arith.constant 0 : i32
    return %arg0, %c0_i32 : i32, i32
  }
  func.func @transform_1(%arg0: i32) -> (i32, i32) {
    %c0_i32 = arith.constant 0 : i32
    %c0_i32_0 = arith.constant 0 : i32
    %c0_i32_1 = arith.constant 0 : i32
    return %c0_i32, %c0_i32_0 : i32, i32
  }
  func.func @transform_2(%arg0: i32) -> (i32, i32) {
    %c0_i32 = arith.constant 0 : i32
    %c0_i32_0 = arith.constant 0 : i32
    %c0_i32_1 = arith.constant 0 : i32
    return %c0_i32, %c0_i32_0 : i32, i32
  }
  func.func @transform_3(%arg0: i32) -> (i32, i32) {
    %c0_i32 = arith.constant 0 : i32
    %c0_i32_0 = arith.constant 0 : i32
    %c0_i32_1 = arith.constant 0 : i32
    return %c0_i32, %c0_i32_0 : i32, i32
  }
  func.func @transform_4(%arg0: i32) -> (i32, i32) {
    %c0_i32 = arith.constant 0 : i32
    %c0_i32_0 = arith.constant 0 : i32
    %c0_i32_1 = arith.constant 0 : i32
    return %c0_i32, %c0_i32_0 : i32, i32
  }
  func.func @transform_5(%arg0: i32) -> (i32, i32) {
    %c0_i32 = arith.constant 0 : i32
    %c0_i32_0 = arith.constant 0 : i32
    return %arg0, %c0_i32 : i32, i32
  }
}

module attributes {stable_mosaic.version = 11 : i64} {
  func.func @_mlp_kernel_resident(%arg0: i32, %arg1: memref<16x32xf32, #tpu.memory_space<vmem>>, %arg2: memref<32x128xbf16, #tpu.memory_space<vmem>>, %arg3: memref<1x128xf32, #tpu.memory_space<vmem>>, %arg4: memref<128x32xbf16, #tpu.memory_space<vmem>>, %arg5: memref<1x32xf32, #tpu.memory_space<vmem>>, %arg6: memref<16x32xf32, #tpu.memory_space<vmem>>) attributes {dimension_semantics = [#tpu.dimension_semantics<parallel>], iteration_bounds = array<i64: 1>, scalar_prefetch = 0 : i64, scratch_operands = 0 : i64, tpu.core_type = #tpu.core_type<tc>, window_params = [{transform_indices = @transform_0, window_bounds = array<i64: 16, 32>}, {pipeline_mode = #tpu.pipeline_mode<synchronous>, transform_indices = @transform_1, window_bounds = array<i64: 32, 128>}, {pipeline_mode = #tpu.pipeline_mode<synchronous>, transform_indices = @transform_2, window_bounds = array<i64: 1, 128>}, {pipeline_mode = #tpu.pipeline_mode<synchronous>, transform_indices = @transform_3, window_bounds = array<i64: 128, 32>}, {pipeline_mode = #tpu.pipeline_mode<synchronous>, transform_indices = @transform_4, window_bounds = array<i64: 1, 32>}, {transform_indices = @transform_5, window_bounds = array<i64: 16, 32>}]} {
    %c0 = arith.constant 0 : index
    %c0_0 = arith.constant 0 : index
    %0 = vector.load %arg1[%c0, %c0_0] : memref<16x32xf32, #tpu.memory_space<vmem>>, vector<16x32xf32>
    %1 = arith.truncf %0 : vector<16x32xf32> to vector<16x32xbf16>
    %c0_1 = arith.constant 0 : index
    %c0_2 = arith.constant 0 : index
    %2 = vector.load %arg2[%c0_1, %c0_2] : memref<32x128xbf16, #tpu.memory_space<vmem>>, vector<32x128xbf16>
    %cst = arith.constant dense<0.000000e+00> : vector<16x128xf32>
    %3 = tpu.matmul %1, %2, %cst {dimension_numbers = #tpu.dot_dimension_numbers<[1], [0], [0], [1], [0, 0, 1, 1], [], []>} : vector<16x32xbf16>, vector<32x128xbf16>, vector<16x128xf32> -> vector<16x128xf32>
    %c0_3 = arith.constant 0 : index
    %c0_4 = arith.constant 0 : index
    %4 = vector.load %arg3[%c0_3, %c0_4] : memref<1x128xf32, #tpu.memory_space<vmem>>, vector<1x128xf32>
    %5 = vector.broadcast %4 : vector<1x128xf32> to vector<16x128xf32>
    %6 = arith.addf %3, %5 : vector<16x128xf32>
    %cst_5 = arith.constant 0.797884583 : f32
    %7 = vector.broadcast %cst_5 : f32 to vector<16x128xf32>
    %8 = arith.mulf %7, %6 : vector<16x128xf32>
    %9 = arith.mulf %6, %6 : vector<16x128xf32>
    %cst_6 = arith.constant 4.471500e-02 : f32
    %10 = vector.broadcast %cst_6 : f32 to vector<16x128xf32>
    %11 = arith.mulf %10, %9 : vector<16x128xf32>
    %cst_7 = arith.constant 1.000000e+00 : f32
    %12 = vector.broadcast %cst_7 : f32 to vector<16x128xf32>
    %13 = arith.addf %12, %11 : vector<16x128xf32>
    %14 = arith.mulf %8, %13 : vector<16x128xf32>
    %cst_8 = arith.constant 2.000000e+00 : f32
    %15 = vector.broadcast %cst_8 : f32 to vector<16x128xf32>
    %16 = arith.mulf %15, %14 : vector<16x128xf32>
    %17 = arith.negf %16 : vector<16x128xf32>
    %18 = math.exp %17 : vector<16x128xf32>
    %cst_9 = arith.constant 1.000000e+00 : f32
    %19 = vector.broadcast %cst_9 : f32 to vector<16x128xf32>
    %20 = arith.addf %19, %18 : vector<16x128xf32>
    %21 = arith.divf %19, %20 : vector<16x128xf32>
    %22 = arith.mulf %6, %21 : vector<16x128xf32>
    %23 = arith.truncf %22 : vector<16x128xf32> to vector<16x128xbf16>
    %c0_10 = arith.constant 0 : index
    %c0_11 = arith.constant 0 : index
    %24 = vector.load %arg4[%c0_10, %c0_11] : memref<128x32xbf16, #tpu.memory_space<vmem>>, vector<128x32xbf16>
    %cst_12 = arith.constant dense<0.000000e+00> : vector<16x32xf32>
    %25 = tpu.matmul %23, %24, %cst_12 {dimension_numbers = #tpu.dot_dimension_numbers<[1], [0], [0], [1], [0, 0, 1, 1], [], []>} : vector<16x128xbf16>, vector<128x32xbf16>, vector<16x32xf32> -> vector<16x32xf32>
    %c0_13 = arith.constant 0 : index
    %c0_14 = arith.constant 0 : index
    %26 = vector.load %arg5[%c0_13, %c0_14] : memref<1x32xf32, #tpu.memory_space<vmem>>, vector<1x32xf32>
    %27 = vector.broadcast %26 : vector<1x32xf32> to vector<16x32xf32>
    %28 = arith.addf %25, %27 : vector<16x32xf32>
    %c0_15 = arith.constant 0 : index
    %c0_16 = arith.constant 0 : index
    %29 = vector.load %arg6[%c0_15, %c0_16] : memref<16x32xf32, #tpu.memory_space<vmem>>, vector<16x32xf32>
    tpu.vector_store %arg6[%c0_15, %c0_16], %28 {strides = array<i32>} : memref<16x32xf32, #tpu.memory_space<vmem>>, vector<16x32xf32>,
    return
  }
  func.func @transform_0(%arg0: i32) -> (i32, i32) {
    %c0_i32 = arith.constant 0 : i32
    %c0_i32_0 = arith.constant 0 : i32
    return %arg0, %c0_i32 : i32, i32
  }
  func.func @transform_1(%arg0: i32) -> (i32, i32) {
    %c0_i32 = arith.constant 0 : i32
    %c0_i32_0 = arith.constant 0 : i32
    %c0_i32_1 = arith.constant 0 : i32
    return %c0_i32, %c0_i32_0 : i32, i32
  }
  func.func @transform_2(%arg0: i32) -> (i32, i32) {
    %c0_i32 = arith.constant 0 : i32
    %c0_i32_0 = arith.constant 0 : i32
    %c0_i32_1 = arith.constant 0 : i32
    return %c0_i32, %c0_i32_0 : i32, i32
  }
  func.func @transform_3(%arg0: i32) -> (i32, i32) {
    %c0_i32 = arith.constant 0 : i32
    %c0_i32_0 = arith.constant 0 : i32
    %c0_i32_1 = arith.constant 0 : i32
    return %c0_i32, %c0_i32_0 : i32, i32
  }
  func.func @transform_4(%arg0: i32) -> (i32, i32) {
    %c0_i32 = arith.constant 0 : i32
    %c0_i32_0 = arith.constant 0 : i32
    %c0_i32_1 = arith.constant 0 : i32
    return %c0_i32, %c0_i32_0 : i32, i32
  }
  func.func @transform_5(%arg0: i32) -> (i32, i32) {
    %c0_i32 = arith.constant 0 : i32
    %c0_i32_0 = arith.constant 0 : i32
    return %arg0, %c0_i32 : i32, i32
  }
}

</mosaic_0001>

<llo_original>
// kernel: tpu_custom_call.1
$region0: #{tpu_custom_call.1}
  #allocation0 [shape = 'u32[]', space=smem, size = 0x4, offset = 0x4, fixed_abs, tag = 'smem constant byte address 0x4 - core index']
  #allocation1 [shape = 'u32[72,128]{1,0:T(1,128)}', space=vmem, size = 0x9000, scoped, tag = 'internal scratch']
  %s0 = inlined_call_operand.vmem [shape: f32[16,32], index: 0, kind: input, shape index: {}]
  %s1 = inlined_call_operand.vmem [shape: bf16[32,128], index: 1, kind: input, shape index: {}]
  %s2 = inlined_call_operand.vmem [shape: f32[1,128], index: 2, kind: input, shape index: {}]
  %s3 = inlined_call_operand.vmem [shape: bf16[128,32], index: 3, kind: input, shape index: {}]
  %s4 = inlined_call_operand.vmem [shape: f32[1,32], index: 4, kind: input, shape index: {}]
  %s5 = inlined_call_operand.hbm [shape: f32[16,32], index: 5, kind: output, shape index: {}]
  %s6 = sld [smem:[#allocation0]]
  $region30: #{tpu_custom_call.1} parent=0
    _
  %s8 = ssub.s32 1, %s6
  %s9 = scalar_select 0, %s8, %s6
  $region1: #{tpu_custom_call.1} parent=0
    #allocation2 [shape = 'u8[8192]{0}', space=vmem, size = 0x2000, scoped, tag = 'output window, operand 0, single buffered']
    #allocation3 [shape = 's32[1]{0}', space=sflag, size = 0x4, scoped, tag = 'scoped memory for tpu_custom_call.1']
    %10 = vsyncpa [#allocation3], 0
    // Predicated region
    $region2: #{tpu_custom_call.1} parent=1 // pred_check
      _
    $region3: #{tpu_custom_call.1} parent=1 // pred_check_branch
      %12 = sbr.rel (0) target = $region5
    $region4: #{tpu_custom_call.1} parent=1 // pred_region
      _
    $region5: #{tpu_custom_call.1} parent=1 // pred_fallthru
      _
    // Predicated region
    $region6: #{tpu_custom_call.1} parent=1 // pred_check
      _
    $region7: #{tpu_custom_call.1} parent=1 // pred_check_branch
      %14 = sbr.rel (0) target = $region9
    $region8: #{tpu_custom_call.1} parent=1 // pred_region
      _
    $region9: #{tpu_custom_call.1} parent=1 // pred_fallthru
      _
    // Predicated region
    $region10: #{tpu_custom_call.1} parent=1 // pred_check
      _
    $region11: #{tpu_custom_call.1} parent=1 // pred_check_branch
      %16 = sbr.rel (0) target = $region13
    $region12: #{tpu_custom_call.1} parent=1 // pred_region
      _
    $region13: #{tpu_custom_call.1} parent=1 // pred_fallthru
      _
    // Predicated region
    $region14: #{tpu_custom_call.1} parent=1 // pred_check
      _
    $region15: #{tpu_custom_call.1} parent=1 // pred_check_branch
      %18 = sbr.rel (0) target = $region17
    $region16: #{tpu_custom_call.1} parent=1 // pred_region
      _
    $region17: #{tpu_custom_call.1} parent=1 // pred_fallthru
      _
    // Predicated region
    $region18: #{tpu_custom_call.1} parent=1 // pred_check
      _
    $region19: #{tpu_custom_call.1} parent=1 // pred_check_branch
      %20 = sbr.rel (0) target = $region21
    $region20: #{tpu_custom_call.1} parent=1 // pred_region
      _
    $region21: #{tpu_custom_call.1} parent=1 // pred_fallthru
      _
    %v22 = vld [vmem:[%s0] sm:$0xff]
    %v23 = vld [vmem:[%s0 + $0x8] sm:$0xff]
    %v24 = vpack.c.bf16 %v23, %v22
    %v25 = vld [vmem:[%s1] sm:$0xf]
    %v26 = vld [vmem:[%s1 + $0x4] sm:$0xf]
    %v27 = vld [vmem:[%s1 + $0x8] sm:$0xf]
    %v28 = vld [vmem:[%s1 + $0xc] sm:$0xf]
    %v29 = vld [vmem:[%s2] sm:$0x1]
    %v31 = vperm.slane %v29, 0
    %v37 = vunpack.c.l.b16 %v25
    %v38 = vunpack.c.l.b16 %v26
    %v39 = vunpack.c.l.b16 %v27
    %v40 = vunpack.c.l.b16 %v28
    %v41 = vpack.c.b16 %v38, %v37
    %v42 = vpack.c.b16 %v40, %v39
    %vm45 = vcmask 261120
    %v47 = vsel %vm45, %v24, 0
    %49 = vmatpush.bf16.msra.mxu0 0
    %50 = vmatpush.bf16.msra.mxu0 0
    %51 = vmatpush.bf16.msra.mxu0 0
    %52 = vmatpush.bf16.msra.mxu0 0
    %53 = vmatpush.bf16.msra.mxu0 0
    %54 = vmatpush.bf16.msra.mxu0 0
    %55 = vmatpush.bf16.msra.mxu0 %v42
    %56 = vmatpush.bf16.msra.mxu0 %v41
    %57 = vmatmul.bf16.gmra.mxu0 %v47
    %v58 = vpop.f32.mrf.mxu0
    %v59 = vadd.f32 %v31, %v58
    %v60 = vpop.f32.mrf.mxu0
    %v61 = vadd.f32 %v31, %v60
    %62 = vdwg.mxu0
    %v63 = vmul.f32 %v59, 0.7978846
    %v64 = vmul.f32 %v61, 0.7978846
    %v65 = vmul.f32 %v59, %v59
    %v66 = vmul.f32 %v61, %v61
    %v67 = vmul.f32 %v65, 0.044715
    %v68 = vmul.f32 %v66, 0.044715
    %v69 = vadd.f32 %v67, 1.0
    %v70 = vadd.f32 %v68, 1.0
    %v71 = vmul.f32 %v63, %v69
    %v72 = vmul.f32 %v64, %v70
    %v73 = vmul.f32 %v71, 2.0
    %v74 = vmul.f32 %v72, 2.0
    %v75 = vxor.u32 %v73, 2147483648
    %v76 = vxor.u32 %v74, 2147483648
    %v77 = vmul.f32 %v75, 1.442695
    %v78 = vpow.pop %v77
    %v79 = vmul.f32 %v76, 1.442695
    %v80 = vpow.pop %v79
    %v81 = vadd.f32 %v78, 1.0
    %v82 = vadd.f32 %v80, 1.0
    %v83 = vrcp.pop %v81
    %v84 = vmul.f32 %v81, %v83
    %v85 = vsub.f32 1.0, %v84
    %v86 = vmul.f32 %v83, %v85
    %v87 = vadd.f32 %v83, %v86
    %vm88 = vweird.f32 %v81
    %vm89 = vweird.f32 %v83
    %vm90 = vmor %vm88, %vm89
    %v91 = vsel %vm90, %v83, %v87
    %v92 = vand.u32 2147483647, %v81
    %vm93 = vcmp.eq.f32.partialorder %v92, 8.507059e+37
    %v94 = vand.u32 %v81, 2147483648
    %v95 = vor.u32 1.1754944e-38, %v94
    %v96 = vsel %vm93, %v95, %v91
    %v97 = vmul.f32 1.0, %v96
    %v98 = vrcp.pop %v82
    %v99 = vmul.f32 %v82, %v98
    %v100 = vsub.f32 1.0, %v99
    %v101 = vmul.f32 %v98, %v100
    %v102 = vadd.f32 %v98, %v101
    %vm103 = vweird.f32 %v82
    %vm104 = vweird.f32 %v98
    %vm105 = vmor %vm103, %vm104
    %v106 = vsel %vm105, %v98, %v102
    %v107 = vand.u32 2147483647, %v82
    %vm108 = vcmp.eq.f32.partialorder %v107, 8.507059e+37
    %v109 = vand.u32 %v82, 2147483648
    %v110 = vor.u32 1.1754944e-38, %v109
    %v111 = vsel %vm108, %v110, %v106
    %v112 = vmul.f32 1.0, %v111
    %v113 = vmul.f32 %v59, %v97
    %v114 = vmul.f32 %v61, %v112
    %v115 = vpack.c.bf16 %v114, %v113
    %v116 = vld [vmem:[%s3] sm:$0xf]
    %v117 = vld [vmem:[%s3 + $0x4] sm:$0xf]
    %v118 = vld [vmem:[%s3 + $0x8] sm:$0xf]
    %v119 = vld [vmem:[%s3 + $0xc] sm:$0xf]
    %v120 = vld [vmem:[%s3 + $0x10] sm:$0xf]
    %v121 = vld [vmem:[%s3 + $0x14] sm:$0xf]
    %v122 = vld [vmem:[%s3 + $0x18] sm:$0xf]
    %v123 = vld [vmem:[%s3 + $0x1c] sm:$0xf]
    %v124 = vld [vmem:[%s3 + $0x20] sm:$0xf]
    %v125 = vld [vmem:[%s3 + $0x24] sm:$0xf]
    %v126 = vld [vmem:[%s3 + $0x28] sm:$0xf]
    %v127 = vld [vmem:[%s3 + $0x2c] sm:$0xf]
    %v128 = vld [vmem:[%s3 + $0x30] sm:$0xf]
    %v129 = vld [vmem:[%s3 + $0x34] sm:$0xf]
    %v130 = vld [vmem:[%s3 + $0x38] sm:$0xf]
    %v131 = vld [vmem:[%s3 + $0x3c] sm:$0xf]
    %v132 = vld [vmem:[%s4] sm:$0x1]
    %v134 = vperm.slane %v132, 0
    %v152 = vunpack.c.l.b16 %v116
    %v153 = vunpack.c.l.b16 %v117
    %v154 = vunpack.c.l.b16 %v118
    %v155 = vunpack.c.l.b16 %v119
    %v156 = vunpack.c.l.b16 %v120
    %v157 = vunpack.c.l.b16 %v121
    %v158 = vunpack.c.l.b16 %v122
    %v159 = vunpack.c.l.b16 %v123
    %v160 = vunpack.c.l.b16 %v124
    %v161 = vunpack.c.l.b16 %v125
    %v162 = vunpack.c.l.b16 %v126
    %v163 = vunpack.c.l.b16 %v127
    %v164 = vunpack.c.l.b16 %v128
    %v165 = vunpack.c.l.b16 %v129
    %v166 = vunpack.c.l.b16 %v130
    %v167 = vunpack.c.l.b16 %v131
    %v168 = vpack.c.b16 %v153, %v152
    %v169 = vpack.c.b16 %v155, %v154
    %v170 = vpack.c.b16 %v157, %v156
    %v171 = vpack.c.b16 %v159, %v158
    %v172 = vpack.c.b16 %v161, %v160
    %v173 = vpack.c.b16 %v163, %v162
    %v174 = vpack.c.b16 %v165, %v164
    %v175 = vpack.c.b16 %v167, %v166
    %184 = vmatpush.bf16.msra.mxu0 %v175
    %185 = vmatpush.bf16.msra.mxu0 %v174
    %186 = vmatpush.bf16.msra.mxu0 %v173
    %187 = vmatpush.bf16.msra.mxu0 %v172
    %188 = vmatpush.bf16.msra.mxu0 %v171
    %189 = vmatpush.bf16.msra.mxu0 %v170
    %190 = vmatpush.bf16.msra.mxu0 %v169
    %191 = vmatpush.bf16.msra.mxu0 %v168
    %192 = vmatmul.bf16.gmra.mxu0 %v115
    %v193 = vpop.f32.mrf.mxu0
    %v194 = vadd.f32 %v134, %v193
    %v195 = vpop.f32.mrf.mxu0
    %v196 = vadd.f32 %v134, %v195
    %197 = vdwg.mxu0
    %198 = vst.msk [vmem:[#allocation2] sm:$0xff] %vm45, %v194
    %199 = vst.msk [vmem:[#allocation2 + $0x8] sm:$0xff] %vm45, %v196
    // Predicated region
    $region22: #{tpu_custom_call.1} parent=1 // pred_check
      _
    $region23: #{tpu_custom_call.1} parent=1 // pred_check_branch
      %201 = sbr.rel (0) target = $region25
    $region24: #{tpu_custom_call.1} parent=1 // pred_region
      %203 = vsyncadd [#allocation3], 0
      %s204 = sshll.u32 [#allocation2], 4
      %s205 = int_to_ptr.vmem [resolvable:$true] %s204
      %s206 = sshll.u32 %s5, 4
      %s207 = int_to_ptr.hbm [resolvable:$true] %s206
      %212 = dma.vmem_to_hbm [thread:$0]  %s205, 256, %s207, [#allocation3], 128, 128, 8
    $region25: #{tpu_custom_call.1} parent=1 // pred_fallthru
      _
    // Predicated region
    $region26: #{tpu_custom_call.1} parent=1 // pred_check
      _
    $region27: #{tpu_custom_call.1} parent=1 // pred_check_branch
      %214 = sbr.rel (0) target = $region29
    $region28: #{tpu_custom_call.1} parent=1 // pred_region
      %216 = dma.done [#allocation3], 256
    $region29: #{tpu_custom_call.1} parent=1 // pred_fallthru
      _
    %217 = vsyncpa [#allocation3], 1

// kernel: tpu_custom_call.1
$region0: #{tpu_custom_call.1}
  #allocation0 [shape = 'u32[]', space=smem, size = 0x4, offset = 0x4, fixed_abs, tag = 'smem constant byte address 0x4 - core index']
  #allocation1 [shape = 'u32[72,128]{1,0:T(1,128)}', space=vmem, size = 0x9000, scoped, tag = 'internal scratch']
  %s0 = inlined_call_operand.vmem [shape: f32[16,32], index: 0, kind: input, shape index: {}]
  %s1 = inlined_call_operand.vmem [shape: bf16[32,128], index: 1, kind: input, shape index: {}]
  %s2 = inlined_call_operand.vmem [shape: f32[1,128], index: 2, kind: input, shape index: {}]
  %s3 = inlined_call_operand.vmem [shape: bf16[128,32], index: 3, kind: input, shape index: {}]
  %s4 = inlined_call_operand.vmem [shape: f32[1,32], index: 4, kind: input, shape index: {}]
  %s5 = inlined_call_operand.hbm [shape: f32[16,32], index: 5, kind: output, shape index: {}]
  %s6 = sld [smem:[#allocation0]]
  $region30: #{tpu_custom_call.1} parent=0
    _
  %s8 = ssub.s32 1, %s6
  %s9 = scalar_select 0, %s8, %s6
  $region1: #{tpu_custom_call.1} parent=0
    #allocation2 [shape = 'u8[8192]{0}', space=vmem, size = 0x2000, scoped, tag = 'output window, operand 0, single buffered']
    #allocation3 [shape = 's32[1]{0}', space=sflag, size = 0x4, scoped, tag = 'scoped memory for tpu_custom_call.1']
    %10 = vsyncpa [#allocation3], 0
    // Predicated region
    $region2: #{tpu_custom_call.1} parent=1 // pred_check
      _
    $region3: #{tpu_custom_call.1} parent=1 // pred_check_branch
      %12 = sbr.rel (0) target = $region5
    $region4: #{tpu_custom_call.1} parent=1 // pred_region
      _
    $region5: #{tpu_custom_call.1} parent=1 // pred_fallthru
      _
    // Predicated region
    $region6: #{tpu_custom_call.1} parent=1 // pred_check
      _
    $region7: #{tpu_custom_call.1} parent=1 // pred_check_branch
      %14 = sbr.rel (0) target = $region9
    $region8: #{tpu_custom_call.1} parent=1 // pred_region
      _
    $region9: #{tpu_custom_call.1} parent=1 // pred_fallthru
      _
    // Predicated region
    $region10: #{tpu_custom_call.1} parent=1 // pred_check
      _
    $region11: #{tpu_custom_call.1} parent=1 // pred_check_branch
      %16 = sbr.rel (0) target = $region13
    $region12: #{tpu_custom_call.1} parent=1 // pred_region
      _
    $region13: #{tpu_custom_call.1} parent=1 // pred_fallthru
      _
    // Predicated region
    $region14: #{tpu_custom_call.1} parent=1 // pred_check
      _
    $region15: #{tpu_custom_call.1} parent=1 // pred_check_branch
      %18 = sbr.rel (0) target = $region17
    $region16: #{tpu_custom_call.1} parent=1 // pred_region
      _
    $region17: #{tpu_custom_call.1} parent=1 // pred_fallthru
      _
    // Predicated region
    $region18: #{tpu_custom_call.1} parent=1 // pred_check
      _
    $region19: #{tpu_custom_call.1} parent=1 // pred_check_branch
      %20 = sbr.rel (0) target = $region21
    $region20: #{tpu_custom_call.1} parent=1 // pred_region
      _
    $region21: #{tpu_custom_call.1} parent=1 // pred_fallthru
      _
    %v22 = vld [vmem:[%s0] sm:$0xff]
    %v23 = vld [vmem:[%s0 + $0x8] sm:$0xff]
    %v24 = vpack.c.bf16 %v23, %v22
    %v25 = vld [vmem:[%s1] sm:$0xf]
    %v26 = vld [vmem:[%s1 + $0x4] sm:$0xf]
    %v27 = vld [vmem:[%s1 + $0x8] sm:$0xf]
    %v28 = vld [vmem:[%s1 + $0xc] sm:$0xf]
    %v29 = vld [vmem:[%s2] sm:$0x1]
    %v31 = vperm.slane %v29, 0
    %v37 = vunpack.c.l.b16 %v25
    %v38 = vunpack.c.l.b16 %v26
    %v39 = vunpack.c.l.b16 %v27
    %v40 = vunpack.c.l.b16 %v28
    %v41 = vpack.c.b16 %v38, %v37
    %v42 = vpack.c.b16 %v40, %v39
    %vm45 = vcmask 261120
    %v47 = vsel %vm45, %v24, 0
    %49 = vmatpush.bf16.msra.mxu0 0
    %50 = vmatpush.bf16.msra.mxu0 0
    %51 = vmatpush.bf16.msra.mxu0 0
    %52 = vmatpush.bf16.msra.mxu0 0
    %53 = vmatpush.bf16.msra.mxu0 0
    %54 = vmatpush.bf16.msra.mxu0 0
    %55 = vmatpush.bf16.msra.mxu0 %v42
    %56 = vmatpush.bf16.msra.mxu0 %v41
    %57 = vmatmul.bf16.gmra.mxu0 %v47
    %v58 = vpop.f32.mrf.mxu0
    %v59 = vadd.f32 %v31, %v58
    %v60 = vpop.f32.mrf.mxu0
    %v61 = vadd.f32 %v31, %v60
    %62 = vdwg.mxu0
    %v63 = vmul.f32 %v59, 0.7978846
    %v64 = vmul.f32 %v61, 0.7978846
    %v65 = vmul.f32 %v59, %v59
    %v66 = vmul.f32 %v61, %v61
    %v67 = vmul.f32 %v65, 0.044715
    %v68 = vmul.f32 %v66, 0.044715
    %v69 = vadd.f32 %v67, 1.0
    %v70 = vadd.f32 %v68, 1.0
    %v71 = vmul.f32 %v63, %v69
    %v72 = vmul.f32 %v64, %v70
    %v73 = vmul.f32 %v71, 2.0
    %v74 = vmul.f32 %v72, 2.0
    %v75 = vxor.u32 %v73, 2147483648
    %v76 = vxor.u32 %v74, 2147483648
    %v77 = vmul.f32 %v75, 1.442695
    %v78 = vpow.pop %v77
    %v79 = vmul.f32 %v76, 1.442695
    %v80 = vpow.pop %v79
    %v81 = vadd.f32 %v78, 1.0
    %v82 = vadd.f32 %v80, 1.0
    %v83 = vrcp.pop %v81
    %v84 = vmul.f32 %v81, %v83
    %v85 = vsub.f32 1.0, %v84
    %v86 = vmul.f32 %v83, %v85
    %v87 = vadd.f32 %v83, %v86
    %vm88 = vweird.f32 %v81
    %vm89 = vweird.f32 %v83
    %vm90 = vmor %vm88, %vm89
    %v91 = vsel %vm90, %v83, %v87
    %v92 = vand.u32 2147483647, %v81
    %vm93 = vcmp.eq.f32.partialorder %v92, 8.507059e+37
    %v94 = vand.u32 %v81, 2147483648
    %v95 = vor.u32 1.1754944e-38, %v94
    %v96 = vsel %vm93, %v95, %v91
    %v97 = vmul.f32 1.0, %v96
    %v98 = vrcp.pop %v82
    %v99 = vmul.f32 %v82, %v98
    %v100 = vsub.f32 1.0, %v99
    %v101 = vmul.f32 %v98, %v100
    %v102 = vadd.f32 %v98, %v101
    %vm103 = vweird.f32 %v82
    %vm104 = vweird.f32 %v98
    %vm105 = vmor %vm103, %vm104
    %v106 = vsel %vm105, %v98, %v102
    %v107 = vand.u32 2147483647, %v82
    %vm108 = vcmp.eq.f32.partialorder %v107, 8.507059e+37
    %v109 = vand.u32 %v82, 2147483648
    %v110 = vor.u32 1.1754944e-38, %v109
    %v111 = vsel %vm108, %v110, %v106
    %v112 = vmul.f32 1.0, %v111
    %v113 = vmul.f32 %v59, %v97
    %v114 = vmul.f32 %v61, %v112
    %v115 = vpack.c.bf16 %v114, %v113
    %v116 = vld [vmem:[%s3] sm:$0xf]
    %v117 = vld [vmem:[%s3 + $0x4] sm:$0xf]
    %v118 = vld [vmem:[%s3 + $0x8] sm:$0xf]
    %v119 = vld [vmem:[%s3 + $0xc] sm:$0xf]
    %v120 = vld [vmem:[%s3 + $0x10] sm:$0xf]
    %v121 = vld [vmem:[%s3 + $0x14] sm:$0xf]
    %v122 = vld [vmem:[%s3 + $0x18] sm:$0xf]
    %v123 = vld [vmem:[%s3 + $0x1c] sm:$0xf]
    %v124 = vld [vmem:[%s3 + $0x20] sm:$0xf]
    %v125 = vld [vmem:[%s3 + $0x24] sm:$0xf]
    %v126 = vld [vmem:[%s3 + $0x28] sm:$0xf]
    %v127 = vld [vmem:[%s3 + $0x2c] sm:$0xf]
    %v128 = vld [vmem:[%s3 + $0x30] sm:$0xf]
    %v129 = vld [vmem:[%s3 + $0x34] sm:$0xf]
    %v130 = vld [vmem:[%s3 + $0x38] sm:$0xf]
    %v131 = vld [vmem:[%s3 + $0x3c] sm:$0xf]
    %v132 = vld [vmem:[%s4] sm:$0x1]
    %v134 = vperm.slane %v132, 0
    %v152 = vunpack.c.l.b16 %v116
    %v153 = vunpack.c.l.b16 %v117
    %v154 = vunpack.c.l.b16 %v118
    %v155 = vunpack.c.l.b16 %v119
    %v156 = vunpack.c.l.b16 %v120
    %v157 = vunpack.c.l.b16 %v121
    %v158 = vunpack.c.l.b16 %v122
    %v159 = vunpack.c.l.b16 %v123
    %v160 = vunpack.c.l.b16 %v124
    %v161 = vunpack.c.l.b16 %v125
    %v162 = vunpack.c.l.b16 %v126
    %v163 = vunpack.c.l.b16 %v127
    %v164 = vunpack.c.l.b16 %v128
    %v165 = vunpack.c.l.b16 %v129
    %v166 = vunpack.c.l.b16 %v130
    %v167 = vunpack.c.l.b16 %v131
    %v168 = vpack.c.b16 %v153, %v152
    %v169 = vpack.c.b16 %v155, %v154
    %v170 = vpack.c.b16 %v157, %v156
    %v171 = vpack.c.b16 %v159, %v158
    %v172 = vpack.c.b16 %v161, %v160
    %v173 = vpack.c.b16 %v163, %v162
    %v174 = vpack.c.b16 %v165, %v164
    %v175 = vpack.c.b16 %v167, %v166
    %184 = vmatpush.bf16.msra.mxu0 %v175
    %185 = vmatpush.bf16.msra.mxu0 %v174
    %186 = vmatpush.bf16.msra.mxu0 %v173
    %187 = vmatpush.bf16.msra.mxu0 %v172
    %188 = vmatpush.bf16.msra.mxu0 %v171
    %189 = vmatpush.bf16.msra.mxu0 %v170
    %190 = vmatpush.bf16.msra.mxu0 %v169
    %191 = vmatpush.bf16.msra.mxu0 %v168
    %192 = vmatmul.bf16.gmra.mxu0 %v115
    %v193 = vpop.f32.mrf.mxu0
    %v194 = vadd.f32 %v134, %v193
    %v195 = vpop.f32.mrf.mxu0
    %v196 = vadd.f32 %v134, %v195
    %197 = vdwg.mxu0
    %198 = vst.msk [vmem:[#allocation2] sm:$0xff] %vm45, %v194
    %199 = vst.msk [vmem:[#allocation2 + $0x8] sm:$0xff] %vm45, %v196
    // Predicated region
    $region22: #{tpu_custom_call.1} parent=1 // pred_check
      _
    $region23: #{tpu_custom_call.1} parent=1 // pred_check_branch
      %201 = sbr.rel (0) target = $region25
    $region24: #{tpu_custom_call.1} parent=1 // pred_region
      %203 = vsyncadd [#allocation3], 0
      %s204 = sshll.u32 [#allocation2], 4
      %s205 = int_to_ptr.vmem [resolvable:$true] %s204
      %s206 = sshll.u32 %s5, 4
      %s207 = int_to_ptr.hbm [resolvable:$true] %s206
      %212 = dma.vmem_to_hbm [thread:$0]  %s205, 256, %s207, [#allocation3], 128, 128, 8
    $region25: #{tpu_custom_call.1} parent=1 // pred_fallthru
      _
    // Predicated region
    $region26: #{tpu_custom_call.1} parent=1 // pred_check
      _
    $region27: #{tpu_custom_call.1} parent=1 // pred_check_branch
      %214 = sbr.rel (0) target = $region29
    $region28: #{tpu_custom_call.1} parent=1 // pred_region
      %216 = dma.done [#allocation3], 256
    $region29: #{tpu_custom_call.1} parent=1 // pred_fallthru
      _
    %217 = vsyncpa [#allocation3], 1

</llo_original>
